<compile_context>
chip_gen: v5e
topology: v5e:2x2
jax: 0.10.0
libtpu: 0.0.40
codegen_flags: <defaults>
</compile_context>

<pallas_src>
import functools

import jax
import jax.numpy as jnp
import numpy as np
from jax.experimental import pallas as pl
from jax.experimental.pallas import tpu as pltpu

WIN = 5            # window size (win=5 in the torch module)
HALF = WIN // 2
EPS = 1e-3         # eps=0.001 in the torch module


def _round_up(x, m):
    return (x + m - 1) // m * m


def _ncc_kernel(i_ref, j_ref, b2_ref, out_ref, *, D, HWp):
    """One batch element: writes its lane-dense (D, 128) sum-of-cc partial."""
    I = i_ref[0]                       # (D, HWp) f32, lane-dense folded (H, W)
    J = j_ref[0]
    B2 = b2_ref[...]                   # (HWp, HWp) folded 2-D band (H & W box)

    # D-axis band (|i - j| <= 2), generated in-kernel — drops an HBM input.
    di = jax.lax.broadcasted_iota(jnp.int32, (D, D), 0)
    dj = jax.lax.broadcasted_iota(jnp.int32, (D, D), 1)
    Bd = (jnp.abs(di - dj) <= HALF).astype(jnp.float32)

    def box3(v):
        # 5x5 zero-padded box sum over the folded (H, W) plane on the MXU ...
        y = jnp.dot(v, B2, preferred_element_type=jnp.float32)       # (D, HWp)
        # ... then the 5-wide zero-padded box sum along D, also on the MXU.
        return jnp.dot(Bd, y, preferred_element_type=jnp.float32)    # (D, HWp)

    # Per-field processing: only the five finished sums must coexist.
    I_sum = box3(I)
    J_sum = box3(J)
    I2_sum = box3(I * I)
    J2_sum = box3(J * J)
    IJ_sum = box3(I * J)

    # NCC math (algebraically identical to the torch module).
    inv_ws = 1.0 / float(WIN ** 3)
    cross = IJ_sum - I_sum * J_sum * inv_ws
    I_var = I2_sum - I_sum * I_sum * inv_ws
    J_var = J2_sum - J_sum * J_sum * inv_ws
    cc = cross * cross / (I_var * J_var + EPS)

    # Lane-dense partial: fold lane tiles with static 128-aligned VPU adds only
    # (no cross-lane XLU reduce, no broadcast); the wrapper finishes the sum.
    part = cc[:, 0:128]
    for q in range(1, HWp // 128):
        part = part + cc[:, q * 128:(q + 1) * 128]
    out_ref[0] = part


def _band2(H, W, HWp):
    """(HWp, HWp) folded 2-D band: 1 iff |dh| <= 2 and |dw| <= 2 (else 0)."""
    h_idx = np.repeat(np.arange(H), W)          # h of folded index i = h*W + w
    w_idx = np.tile(np.arange(W), H)            # w of folded index
    band = ((np.abs(h_idx[:, None] - h_idx[None, :]) <= HALF)
            & (np.abs(w_idx[:, None] - w_idx[None, :]) <= HALF)).astype(np.float32)
    out = np.zeros((HWp, HWp), np.float32)
    out[:H * W, :H * W] = band                  # padded lanes -> all-zero rows/cols
    return jnp.asarray(out)


def _vmem_limit_bytes(D, HWp):
    dp = _round_up(D, 8)
    vol = dp * HWp * 4                          # one (D, HWp) f32 tile
    band = HWp * HWp * 4                        # (HWp, HWp) f32 band matrix
    need = (2 * 2 * vol                         # I, J blocks, double-buffered
            + 2 * band                          # band matrix (+ second buffer)
            + 2 * dp * 128 * 4                  # output block, double-buffered
            + 16 * vol                          # live temporaries (5 sums + math)
            + (4 << 20))                        # compiler-internal headroom
    try:
        cap = int(pltpu.get_tpu_info().vmem_capacity_bytes)
    except Exception:
        cap = 64 << 20                          # conservative (v7x-sized) fallback
    upper = (cap * 4) // 5                      # ~51 MiB v7x, ~102 MiB v5e/v6e
    return int(min(max(need, 32 << 20), upper))


def ncc_loss(I, J):
    """NCC forward pass. I, J: (N, 1, D, H, W) float32 (NCDHW)."""
    N, C, D, H, W = I.shape
    assert C == 1, "conv3d weight (1,1,5,5,5) implies a single input channel"
    HW = H * W
    HWp = _round_up(HW, 128)

    # Fold (H, W) into a lane-dense last dim in the wrapper (free HBM reshape),
    # zero-pad to a multiple of 128 (padded lanes give cc == 0, see band2).
    Ix = I.reshape(N, D, HW).astype(jnp.float32)
    Jx = J.reshape(N, D, HW).astype(jnp.float32)
    if HWp != HW:
        Ix = jnp.pad(Ix, ((0, 0), (0, 0), (0, HWp - HW)))
        Jx = jnp.pad(Jx, ((0, 0), (0, 0), (0, HWp - HW)))

    band2 = _band2(H, W, HWp)

    kernel = functools.partial(_ncc_kernel, D=D, HWp=HWp)
    partials = pl.pallas_call(
        kernel,
        out_shape=jax.ShapeDtypeStruct((N, D, 128), jnp.float32),
        grid_spec=pltpu.PrefetchScalarGridSpec(
            num_scalar_prefetch=0,
            grid=(N,),
            in_specs=[
                pl.BlockSpec((1, D, HWp), lambda b: (b, 0, 0)),
                pl.BlockSpec((1, D, HWp), lambda b: (b, 0, 0)),
                pl.BlockSpec((HWp, HWp), lambda b: (0, 0)),
            ],
            out_specs=pl.BlockSpec((1, D, 128), lambda b: (b, 0, 0)),
        ),
        compiler_params=pltpu.CompilerParams(
            dimension_semantics=("parallel",),
            vmem_limit_bytes=_vmem_limit_bytes(D, HWp),
        ),
    )(Ix, Jx, band2)

    cc_sum = jnp.sum(partials)
    # mean over (N, 1, D, H, W) elements, then negate (torch: -torch.mean(cc))
    return -1.0 * cc_sum / float(N * C * D * H * W)


def ncc_ref(I, J, win=WIN, eps=EPS):
    """Pure-JAX reference mirroring the torch module element-for-element."""
    N, C, D, H, W = I.shape
    pad = win // 2

    def box(x):
        xp = jnp.pad(x, ((0, 0), (0, 0), (pad, pad), (pad, pad), (pad, pad)))
        out = jnp.zeros_like(x)
        for a in range(win):
            for b in range(win):
                for c in range(win):
                    out = out + xp[:, :, a:a + D, b:b + H, c:c + W]
        return out

    I_sum, J_sum = box(I), box(J)
    I2_sum, J2_sum, IJ_sum = box(I * I), box(J * J), box(I * J)
    ws = float(win ** 3)
    u_I, u_J = I_sum / ws, J_sum / ws
    cross = IJ_sum - u_J * I_sum - u_I * J_sum + u_I * u_J * ws
    I_var = I2_sum - 2.0 * u_I * I_sum + u_I * u_I * ws
    J_var = J2_sum - 2.0 * u_J * J_sum + u_J * u_J * ws
    cc = cross * cross / (I_var * J_var + eps)
    return -1.0 * jnp.mean(cc)


if __name__ == "__main__":
    key = jax.random.PRNGKey(0)
    k1, k2 = jax.random.split(key)
    N, C, D, H, W = 2, 1, 8, 8, 16
    I = jax.random.normal(k1, (N, C, D, H, W), dtype=jnp.float32)
    J = jax.random.normal(k2, (N, C, D, H, W), dtype=jnp.float32)

    out = jax.jit(ncc_loss)(I, J)
    out = jax.block_until_ready(out)

    ref = ncc_ref(I, J)
    assert np.allclose(np.asarray(out), np.asarray(ref), rtol=1e-3, atol=1e-6), (
        float(out), float(ref))

    print("KERNEL_OK")
</pallas_src>

<mosaic_0001>
module attributes {stable_mosaic.version = 11 : i64} {
  func.func @_ncc_kernel(%arg0: i32, %arg1: memref<1x8x128xf32, #tpu.memory_space<vmem>>, %arg2: memref<1x8x128xf32, #tpu.memory_space<vmem>>, %arg3: memref<128x128xf32, #tpu.memory_space<vmem>>, %arg4: memref<1x8x128xf32, #tpu.memory_space<vmem>>) attributes {dimension_semantics = [#tpu.dimension_semantics<parallel>], iteration_bounds = array<i64: 2>, scalar_prefetch = 0 : i64, scratch_operands = 0 : i64, tpu.core_type = #tpu.core_type<tc>, window_params = [{transform_indices = @transform_0, window_bounds = array<i64: 1, 8, 128>}, {transform_indices = @transform_1, window_bounds = array<i64: 1, 8, 128>}, {pipeline_mode = #tpu.pipeline_mode<synchronous>, transform_indices = @transform_2, window_bounds = array<i64: 128, 128>}, {transform_indices = @transform_3, window_bounds = array<i64: 1, 8, 128>}]} {
    %c0 = arith.constant 0 : index
    %c0_0 = arith.constant 0 : index
    %c0_1 = arith.constant 0 : index
    %0 = vector.load %arg1[%c0, %c0_0, %c0_1] : memref<1x8x128xf32, #tpu.memory_space<vmem>>, vector<1x8x128xf32>
    %1 = vector.shape_cast %0 : vector<1x8x128xf32> to vector<8x128xf32>
    %c0_2 = arith.constant 0 : index
    %c0_3 = arith.constant 0 : index
    %c0_4 = arith.constant 0 : index
    %2 = vector.load %arg2[%c0_2, %c0_3, %c0_4] : memref<1x8x128xf32, #tpu.memory_space<vmem>>, vector<1x8x128xf32>
    %3 = vector.shape_cast %2 : vector<1x8x128xf32> to vector<8x128xf32>
    %c0_5 = arith.constant 0 : index
    %c0_6 = arith.constant 0 : index
    %4 = vector.load %arg3[%c0_5, %c0_6] : memref<128x128xf32, #tpu.memory_space<vmem>>, vector<128x128xf32>
    %5 = tpu.iota {dimensions = array<i32: 0>} : vector<8x8xi32>
    %6 = tpu.iota {dimensions = array<i32: 1>} : vector<8x8xi32>
    %7 = arith.subi %5, %6 : vector<8x8xi32>
    %8 = math.absi %7 : vector<8x8xi32>
    %c2_i32 = arith.constant 2 : i32
    %9 = vector.broadcast %c2_i32 : i32 to vector<8x8xi32>
    %10 = arith.cmpi sle, %8, %9 : vector<8x8xi32>
    %11 = arith.extui %10 : vector<8x8xi1> to vector<8x8xi32>
    %12 = arith.sitofp %11 : vector<8x8xi32> to vector<8x8xf32>
    %cst = arith.constant dense<0.000000e+00> : vector<8x128xf32>
    %13 = tpu.matmul %1, %4, %cst {dimension_numbers = #tpu.dot_dimension_numbers<[1], [0], [0], [1], [0, 0, 1, 1], [], []>} : vector<8x128xf32>, vector<128x128xf32>, vector<8x128xf32> -> vector<8x128xf32>
    %cst_7 = arith.constant dense<0.000000e+00> : vector<8x128xf32>
    %14 = tpu.matmul %12, %13, %cst_7 {dimension_numbers = #tpu.dot_dimension_numbers<[1], [0], [0], [1], [0, 0, 1, 1], [], []>} : vector<8x8xf32>, vector<8x128xf32>, vector<8x128xf32> -> vector<8x128xf32>
    %cst_8 = arith.constant dense<0.000000e+00> : vector<8x128xf32>
    %15 = tpu.matmul %3, %4, %cst_8 {dimension_numbers = #tpu.dot_dimension_numbers<[1], [0], [0], [1], [0, 0, 1, 1], [], []>} : vector<8x128xf32>, vector<128x128xf32>, vector<8x128xf32> -> vector<8x128xf32>
    %cst_9 = arith.constant dense<0.000000e+00> : vector<8x128xf32>
    %16 = tpu.matmul %12, %15, %cst_9 {dimension_numbers = #tpu.dot_dimension_numbers<[1], [0], [0], [1], [0, 0, 1, 1], [], []>} : vector<8x8xf32>, vector<8x128xf32>, vector<8x128xf32> -> vector<8x128xf32>
    %17 = arith.mulf %1, %1 : vector<8x128xf32>
    %cst_10 = arith.constant dense<0.000000e+00> : vector<8x128xf32>
    %18 = tpu.matmul %17, %4, %cst_10 {dimension_numbers = #tpu.dot_dimension_numbers<[1], [0], [0], [1], [0, 0, 1, 1], [], []>} : vector<8x128xf32>, vector<128x128xf32>, vector<8x128xf32> -> vector<8x128xf32>
    %cst_11 = arith.constant dense<0.000000e+00> : vector<8x128xf32>
    %19 = tpu.matmul %12, %18, %cst_11 {dimension_numbers = #tpu.dot_dimension_numbers<[1], [0], [0], [1], [0, 0, 1, 1], [], []>} : vector<8x8xf32>, vector<8x128xf32>, vector<8x128xf32> -> vector<8x128xf32>
    %20 = arith.mulf %3, %3 : vector<8x128xf32>
    %cst_12 = arith.constant dense<0.000000e+00> : vector<8x128xf32>
    %21 = tpu.matmul %20, %4, %cst_12 {dimension_numbers = #tpu.dot_dimension_numbers<[1], [0], [0], [1], [0, 0, 1, 1], [], []>} : vector<8x128xf32>, vector<128x128xf32>, vector<8x128xf32> -> vector<8x128xf32>
    %cst_13 = arith.constant dense<0.000000e+00> : vector<8x128xf32>
    %22 = tpu.matmul %12, %21, %cst_13 {dimension_numbers = #tpu.dot_dimension_numbers<[1], [0], [0], [1], [0, 0, 1, 1], [], []>} : vector<8x8xf32>, vector<8x128xf32>, vector<8x128xf32> -> vector<8x128xf32>
    %23 = arith.mulf %1, %3 : vector<8x128xf32>
    %cst_14 = arith.constant dense<0.000000e+00> : vector<8x128xf32>
    %24 = tpu.matmul %23, %4, %cst_14 {dimension_numbers = #tpu.dot_dimension_numbers<[1], [0], [0], [1], [0, 0, 1, 1], [], []>} : vector<8x128xf32>, vector<128x128xf32>, vector<8x128xf32> -> vector<8x128xf32>
    %cst_15 = arith.constant dense<0.000000e+00> : vector<8x128xf32>
    %25 = tpu.matmul %12, %24, %cst_15 {dimension_numbers = #tpu.dot_dimension_numbers<[1], [0], [0], [1], [0, 0, 1, 1], [], []>} : vector<8x8xf32>, vector<8x128xf32>, vector<8x128xf32> -> vector<8x128xf32>
    %26 = arith.mulf %14, %16 : vector<8x128xf32>
    %cst_16 = arith.constant 8.000000e-03 : f32
    %27 = vector.broadcast %cst_16 : f32 to vector<8x128xf32>
    %28 = arith.mulf %26, %27 : vector<8x128xf32>
    %29 = arith.subf %25, %28 : vector<8x128xf32>
    %30 = arith.mulf %14, %14 : vector<8x128xf32>
    %cst_17 = arith.constant 8.000000e-03 : f32
    %31 = vector.broadcast %cst_17 : f32 to vector<8x128xf32>
    %32 = arith.mulf %30, %31 : vector<8x128xf32>
    %33 = arith.subf %19, %32 : vector<8x128xf32>
    %34 = arith.mulf %16, %16 : vector<8x128xf32>
    %cst_18 = arith.constant 8.000000e-03 : f32
    %35 = vector.broadcast %cst_18 : f32 to vector<8x128xf32>
    %36 = arith.mulf %34, %35 : vector<8x128xf32>
    %37 = arith.subf %22, %36 : vector<8x128xf32>
    %38 = arith.mulf %29, %29 : vector<8x128xf32>
    %39 = arith.mulf %33, %37 : vector<8x128xf32>
    %cst_19 = arith.constant 1.000000e-03 : f32
    %40 = vector.broadcast %cst_19 : f32 to vector<8x128xf32>
    %41 = arith.addf %39, %40 : vector<8x128xf32>
    %42 = arith.divf %38, %41 : vector<8x128xf32>
    %c0_20 = arith.constant 0 : index
    %c0_21 = arith.constant 0 : index
    %c0_22 = arith.constant 0 : index
    %43 = vector.load %arg4[%c0_20, %c0_21, %c0_22] : memref<1x8x128xf32, #tpu.memory_space<vmem>>, vector<1x8x128xf32>
    %44 = vector.shape_cast %43 : vector<1x8x128xf32> to vector<8x128xf32>
    %45 = vector.shape_cast %42 : vector<8x128xf32> to vector<1x8x128xf32>
    tpu.vector_store %arg4[%c0_20, %c0_21, %c0_22], %45 {strides = array<i32>} : memref<1x8x128xf32, #tpu.memory_space<vmem>>, vector<1x8x128xf32>,
    return
  }
  func.func @transform_0(%arg0: i32) -> (i32, i32, i32) {
    %c0_i32 = arith.constant 0 : i32
    %c0_i32_0 = arith.constant 0 : i32
    %c0_i32_1 = arith.constant 0 : i32
    return %arg0, %c0_i32, %c0_i32_0 : i32, i32, i32
  }
  func.func @transform_1(%arg0: i32) -> (i32, i32, i32) {
    %c0_i32 = arith.constant 0 : i32
    %c0_i32_0 = arith.constant 0 : i32
    %c0_i32_1 = arith.constant 0 : i32
    return %arg0, %c0_i32, %c0_i32_0 : i32, i32, i32
  }
  func.func @transform_2(%arg0: i32) -> (i32, i32) {
    %c0_i32 = arith.constant 0 : i32
    %c0_i32_0 = arith.constant 0 : i32
    %c0_i32_1 = arith.constant 0 : i32
    return %c0_i32, %c0_i32_0 : i32, i32
  }
  func.func @transform_3(%arg0: i32) -> (i32, i32, i32) {
    %c0_i32 = arith.constant 0 : i32
    %c0_i32_0 = arith.constant 0 : i32
    %c0_i32_1 = arith.constant 0 : i32
    return %arg0, %c0_i32, %c0_i32_0 : i32, i32, i32
  }
}

</mosaic_0001>

<llo_original>
// kernel: ncc_loss.1
$region0: #{ncc_loss.1}
  #allocation0 [shape = 'u32[]', space=smem, size = 0x4, offset = 0x4, fixed_abs, tag = 'smem constant byte address 0x4 - core index']
  #allocation1 [shape = 'u32[72,128]{1,0:T(1,128)}', space=vmem, size = 0x9000, scoped, tag = 'internal scratch']
  %s0 = inlined_call_operand.vmem [shape: f32[2,8,128], index: 0, kind: input, shape index: {}]
  %s1 = inlined_call_operand.vmem [shape: f32[2,8,128], index: 1, kind: input, shape index: {}]
  %s2 = inlined_call_operand.vmem [shape: f32[128,128], index: 2, kind: input, shape index: {}]
  %s3 = inlined_call_operand.vmem [shape: f32[2,8,128], index: 3, kind: output, shape index: {}]
  %s4 = sld [smem:[#allocation0]]
  $region45: #{ncc_loss.1} parent=0
    _
  %s6 = ssub.s32 1, %s4
  %s7 = scalar_select 0, %s6, %s4
  loop: start=0, step=1, limit=4
  $region2: #{ncc_loss.1} parent=0 // loop_pre_header
    _
  $region3: #{ncc_loss.1} parent=0 // loop_header
    %s9 = sphi 0, %s13
    %p10 = scmp.ge.s32.totalorder %s9, 4
    %s19 = sphi 0, %s21
    %s22 = sphi 0, %s19
    %s23 = sphi 0, %s22
    %s39 = sphi 0, %s23
    %s45 = sphi 0, %s47
    %s48 = sphi 0, %s45
    %s49 = sphi 0, %s48
    %s65 = sphi 0, %s49
    %s69 = sphi 0, %s69
    %s71 = sphi 0, %s69
    %s72 = sphi 0, %s71
    %s86 = sphi 0, %s72
    %s92 = sphi 0, %s94
    %s95 = sphi 0, %s92
    %s96 = sphi 0, %s95
    %s112 = sphi 0, %s96
  $region4: #{ncc_loss.1} parent=0 // loop_header_branch
    %12 = sbr.rel (%p10) target = $region8
  $region5: #{ncc_loss.1} parent=0 // loop_body
    %s14 = ssub.s32 %s9, 1
    %s15 = ssub.s32 %s9, 2
    %s16 = sadd.s32 %s9, 1
    %s17 = ssub.s32 %s9, %s16
    %p18 = scmp.eq.s32.totalorder %s17, 0
    %s20 = sadd.s32 %s19, 1
    %s21 = scalar_select %p18, %s19, %s20
    %p24 = pneg %p18
    %p25 = scmp.eq.s32.totalorder %s9, 1
    %p26 = por %p24, %p25
    %p27 = scmp.ne.s32.totalorder %s19, %s22
    %p28 = scmp.eq.s32.totalorder %s9, 0
    %p29 = por %p27, %p28
    %p30 = scmp.ne.s32.totalorder %s19, %s22
    %p31 = scmp.eq.s32.totalorder %s14, 1
    %p32 = por %p30, %p31
    %p33 = scmp.ne.s32.totalorder %s22, %s23
    %p34 = scmp.eq.s32.totalorder %s14, 0
    %p35 = por %p33, %p34
    %p36 = scmp.ne.s32.totalorder %s22, %s23
    %p37 = scmp.eq.s32.totalorder %s15, 1
    %p38 = por %p36, %p37
    %p40 = scmp.ne.s32.totalorder %s23, %s39
    %p41 = scmp.eq.s32.totalorder %s15, 0
    %p42 = por %p40, %p41
    %s43 = ssub.s32 %s9, %s16
    %p44 = scmp.eq.s32.totalorder %s43, 0
    %s46 = sadd.s32 %s45, 1
    %s47 = scalar_select %p44, %s45, %s46
    %p50 = pneg %p44
    %p51 = scmp.eq.s32.totalorder %s9, 1
    %p52 = por %p50, %p51
    %p53 = scmp.ne.s32.totalorder %s45, %s48
    %p54 = scmp.eq.s32.totalorder %s9, 0
    %p55 = por %p53, %p54
    %p56 = scmp.ne.s32.totalorder %s45, %s48
    %p57 = scmp.eq.s32.totalorder %s14, 1
    %p58 = por %p56, %p57
    %p59 = scmp.ne.s32.totalorder %s48, %s49
    %p60 = scmp.eq.s32.totalorder %s14, 0
    %p61 = por %p59, %p60
    %p62 = scmp.ne.s32.totalorder %s48, %s49
    %p63 = scmp.eq.s32.totalorder %s15, 1
    %p64 = por %p62, %p63
    %p66 = scmp.ne.s32.totalorder %s49, %s65
    %p67 = scmp.eq.s32.totalorder %s15, 0
    %p68 = por %p66, %p67
    %s70 = sadd.s32 %s69, 1
    %p73 = scmp.eq.s32.totalorder %s9, 1
    %p74 = scmp.ne.s32.totalorder %s69, %s71
    %p75 = scmp.eq.s32.totalorder %s9, 0
    %p76 = por %p74, %p75
    %p77 = scmp.ne.s32.totalorder %s69, %s71
    %p78 = scmp.eq.s32.totalorder %s14, 1
    %p79 = por %p77, %p78
    %p80 = scmp.ne.s32.totalorder %s71, %s72
    %p81 = scmp.eq.s32.totalorder %s14, 0
    %p82 = por %p80, %p81
    %p83 = scmp.ne.s32.totalorder %s71, %s72
    %p84 = scmp.eq.s32.totalorder %s15, 1
    %p85 = por %p83, %p84
    %p87 = scmp.ne.s32.totalorder %s72, %s86
    %p88 = scmp.eq.s32.totalorder %s15, 0
    %p89 = por %p87, %p88
    %s90 = ssub.s32 %s9, %s16
    %p91 = scmp.eq.s32.totalorder %s90, 0
    %s93 = sadd.s32 %s92, 1
    %s94 = scalar_select %p91, %s92, %s93
    %p97 = pneg %p91
    %p98 = scmp.eq.s32.totalorder %s9, 1
    %p99 = por %p97, %p98
    %p100 = scmp.ne.s32.totalorder %s92, %s95
    %p101 = scmp.eq.s32.totalorder %s9, 0
    %p102 = por %p100, %p101
    %p103 = scmp.ne.s32.totalorder %s92, %s95
    %p104 = scmp.eq.s32.totalorder %s14, 1
    %p105 = por %p103, %p104
    %p106 = scmp.ne.s32.totalorder %s95, %s96
    %p107 = scmp.eq.s32.totalorder %s14, 0
    %p108 = por %p106, %p107
    %p109 = scmp.ne.s32.totalorder %s95, %s96
    %p110 = scmp.eq.s32.totalorder %s15, 1
    %p111 = por %p109, %p110
    %p113 = scmp.ne.s32.totalorder %s96, %s112
    %p114 = scmp.eq.s32.totalorder %s15, 0
    %p115 = por %p113, %p114
    %p116 = scmp.le.s32.totalorder 1, %s9
    %p117 = scmp.lt.s32.totalorder %s9, 3
    %p118 = pnand %p116, %p117
    %p119 = pneg %p118
    // Predicated region
    $region9: #{ncc_loss.1} parent=5 // pred_check
      _
    $region10: #{ncc_loss.1} parent=5 // pred_check_branch
      %121 = sbr.rel (%p118) target = $region12
    $region11: #{ncc_loss.1} parent=5 // pred_region
      %s122 = ssub.s32 %s9, 1
      // Predicated region
      $region13: #{ncc_loss.1} parent=11 // pred_check
        %p123 = pneg %p82
      $region14: #{ncc_loss.1} parent=11 // pred_check_branch
        %125 = sbr.rel (%p123) target = $region16
      $region15: #{ncc_loss.1} parent=11 // pred_region
        _
      $region16: #{ncc_loss.1} parent=11 // pred_fallthru
        _
    $region12: #{ncc_loss.1} parent=5 // pred_fallthru
      _
    %p126 = scmp.lt.s32.totalorder %s9, 2
    // Predicated region
    $region17: #{ncc_loss.1} parent=5 // pred_check
      %p127 = pneg %p126
    $region18: #{ncc_loss.1} parent=5 // pred_check_branch
      %129 = sbr.rel (%p127) target = $region20
    $region19: #{ncc_loss.1} parent=5 // pred_region
      // Predicated region
      $region21: #{ncc_loss.1} parent=19 // pred_check
        %p130 = pneg %p29
      $region22: #{ncc_loss.1} parent=19 // pred_check_branch
        %132 = sbr.rel (%p130) target = $region24
      $region23: #{ncc_loss.1} parent=19 // pred_region
        %p133 = scmp.lt.s32.totalorder %s9, 1
        %s134 = scalar_select %p133, %s9, 1
        %s135 = smul.addr %s134, 8
        %s136 = scalar_lea.vmem %s0, %s135
      $region24: #{ncc_loss.1} parent=19 // pred_fallthru
        _
      // Predicated region
      $region25: #{ncc_loss.1} parent=19 // pred_check
        %p137 = pneg %p55
      $region26: #{ncc_loss.1} parent=19 // pred_check_branch
        %139 = sbr.rel (%p137) target = $region28
      $region27: #{ncc_loss.1} parent=19 // pred_region
        %p140 = scmp.lt.s32.totalorder %s9, 1
        %s141 = scalar_select %p140, %s9, 1
        %s142 = smul.addr %s141, 8
        %s143 = scalar_lea.vmem %s1, %s142
      $region28: #{ncc_loss.1} parent=19 // pred_fallthru
        _
    $region20: #{ncc_loss.1} parent=5 // pred_fallthru
      _
    %p144 = scmp.le.s32.totalorder 1, %s9
    %p145 = scmp.lt.s32.totalorder %s9, 3
    %p146 = pnand %p144, %p145
    %p147 = pneg %p146
    // Predicated region
    $region29: #{ncc_loss.1} parent=5 // pred_check
      _
    $region30: #{ncc_loss.1} parent=5 // pred_check_branch
      %149 = sbr.rel (%p146) target = $region32
    $region31: #{ncc_loss.1} parent=5 // pred_region
      %s150 = ssub.s32 %s9, 1
      %p151 = scmp.lt.s32.totalorder %s14, 1
      %s152 = scalar_select %p151, %s14, 1
      %s153 = smul.addr %s152, 8
      %s154 = scalar_lea.vmem %s0, %s153
      %p155 = pneg %p35
      %p156 = pneg %p32
      %p157 = scmp.lt.s32.totalorder %s14, 1
      %s158 = scalar_select %p157, %s14, 1
      %s159 = smul.addr %s158, 8
      %s160 = scalar_lea.vmem %s1, %s159
      %p161 = pneg %p61
      %p162 = pneg %p58
      %p163 = pneg %p82
      %p164 = pneg %p79
      %p165 = pneg %p108
      %p166 = pneg %p105
      %p167 = scmp.lt.s32.totalorder %s14, 1
      %s168 = scalar_select %p167, %s14, 1
      %s169 = smul.addr %s168, 8
      %s170 = scalar_lea.vmem %s3, %s169
      %p171 = scmp.lt.s32.totalorder %s14, 1
      %s172 = scalar_select %p171, %s14, 1
      %s173 = smul.addr %s172, 8
      %s174 = scalar_lea.vmem %s0, %s173
      %p175 = scmp.lt.s32.totalorder %s14, 1
      %s176 = scalar_select %p175, %s14, 1
      %s177 = smul.addr %s176, 8
      %s178 = scalar_lea.vmem %s1, %s177
      %p179 = scmp.lt.s32.totalorder %s14, 1
      %s180 = scalar_select %p179, %s14, 1
      %s181 = smul.addr %s180, 8
      %s182 = scalar_lea.vmem %s3, %s181
      %v183 = vld [vmem:[%s174] sm:$0xff]
      %v184 = vld [vmem:[%s178] sm:$0xff]
      %v185 = vld [vmem:[%s2] sm:$0xff]
      %v186 = vld [vmem:[%s2 + $0x8] sm:$0xff]
      %v187 = vld [vmem:[%s2 + $0x10] sm:$0xff]
      %v188 = vld [vmem:[%s2 + $0x18] sm:$0xff]
      %v189 = vld [vmem:[%s2 + $0x20] sm:$0xff]
      %v190 = vld [vmem:[%s2 + $0x28] sm:$0xff]
      %v191 = vld [vmem:[%s2 + $0x30] sm:$0xff]
      %v192 = vld [vmem:[%s2 + $0x38] sm:$0xff]
      %v193 = vld [vmem:[%s2 + $0x40] sm:$0xff]
      %v194 = vld [vmem:[%s2 + $0x48] sm:$0xff]
      %v195 = vld [vmem:[%s2 + $0x50] sm:$0xff]
      %v196 = vld [vmem:[%s2 + $0x58] sm:$0xff]
      %v197 = vld [vmem:[%s2 + $0x60] sm:$0xff]
      %v198 = vld [vmem:[%s2 + $0x68] sm:$0xff]
      %v199 = vld [vmem:[%s2 + $0x70] sm:$0xff]
      %v200 = vld [vmem:[%s2 + $0x78] sm:$0xff]
      %v201 = vlaneseq
      %v202 = vshrl.u32 %v201, 7
      %v203 = vlaneseq
      %v204 = vand.u32 %v203, 127
      %v205 = vsub.s32 %v202, %v204
      %vm206 = vcmp.lt.s32.totalorder %v205, 0
      %v207 = vsub.s32 0, %v205
      %v208 = vsel %vm206, %v207, %v205
      %vm209 = vcmp.le.s32.totalorder %v208, 2
      %v210 = vsel %vm209, 1, 0
      %v211 = vcvt.s32.f32 %v210
      %212 = vmatpush.msra.mxu0 %v200
      %213 = vmatpush.msra.mxu0 %v199
      %214 = vmatpush.msra.mxu0 %v198
      %215 = vmatpush.msra.mxu0 %v197
      %216 = vmatpush.msra.mxu0 %v196
      %217 = vmatpush.msra.mxu0 %v195
      %218 = vmatpush.msra.mxu0 %v194
      %219 = vmatpush.msra.mxu0 %v193
      %220 = vmatpush.msra.mxu0 %v192
      %221 = vmatpush.msra.mxu0 %v191
      %222 = vmatpush.msra.mxu0 %v190
      %223 = vmatpush.msra.mxu0 %v189
      %224 = vmatpush.msra.mxu0 %v188
      %225 = vmatpush.msra.mxu0 %v187
      %226 = vmatpush.msra.mxu0 %v186
      %227 = vmatpush.msra.mxu0 %v185
      %228 = vmatmul.f32.gmra.mxu0 %v183
      %v229 = vpop.f32.mrf.mxu0
      %v230 = vadd.f32 0.0, %v229
      %231 = vdwg.mxu0
      %vm232 = vcmask 64512
      %v234 = vsel %vm232, %v211, 0
      %236 = vmatpush.msra.mxu0 0.0
      %237 = vmatpush.msra.mxu0 0.0
      %238 = vmatpush.msra.mxu0 0.0
      %239 = vmatpush.msra.mxu0 0.0
      %240 = vmatpush.msra.mxu0 0.0
      %241 = vmatpush.msra.mxu0 0.0
      %242 = vmatpush.msra.mxu0 0.0
      %243 = vmatpush.msra.mxu0 0.0
      %244 = vmatpush.msra.mxu0 0.0
      %245 = vmatpush.msra.mxu0 0.0
      %246 = vmatpush.msra.mxu0 0.0
      %247 = vmatpush.msra.mxu0 0.0
      %248 = vmatpush.msra.mxu0 0.0
      %249 = vmatpush.msra.mxu0 0.0
      %250 = vmatpush.msra.mxu0 0.0
      %251 = vmatpush.msra.mxu0 %v230
      %252 = vmatmul.f32.gmra.mxu0 %v234
      %v253 = vpop.f32.mrf.mxu0
      %v254 = vadd.f32 0.0, %v253
      %255 = vdwg.mxu0
      %256 = vmatpush.msra.mxu0 %v200
      %257 = vmatpush.msra.mxu0 %v199
      %258 = vmatpush.msra.mxu0 %v198
      %259 = vmatpush.msra.mxu0 %v197
      %260 = vmatpush.msra.mxu0 %v196
      %261 = vmatpush.msra.mxu0 %v195
      %262 = vmatpush.msra.mxu0 %v194
      %263 = vmatpush.msra.mxu0 %v193
      %264 = vmatpush.msra.mxu0 %v192
      %265 = vmatpush.msra.mxu0 %v191
      %266 = vmatpush.msra.mxu0 %v190
      %267 = vmatpush.msra.mxu0 %v189
      %268 = vmatpush.msra.mxu0 %v188
      %269 = vmatpush.msra.mxu0 %v187
      %270 = vmatpush.msra.mxu0 %v186
      %271 = vmatpush.msra.mxu0 %v185
      %272 = vmatmul.f32.gmra.mxu0 %v184
      %v273 = vpop.f32.mrf.mxu0
      %v274 = vadd.f32 0.0, %v273
      %275 = vdwg.mxu0
      %276 = vmatpush.msra.mxu0 0.0
      %277 = vmatpush.msra.mxu0 0.0
      %278 = vmatpush.msra.mxu0 0.0
      %279 = vmatpush.msra.mxu0 0.0
      %280 = vmatpush.msra.mxu0 0.0
      %281 = vmatpush.msra.mxu0 0.0
      %282 = vmatpush.msra.mxu0 0.0
      %283 = vmatpush.msra.mxu0 0.0
      %284 = vmatpush.msra.mxu0 0.0
      %285 = vmatpush.msra.mxu0 0.0
      %286 = vmatpush.msra.mxu0 0.0
      %287 = vmatpush.msra.mxu0 0.0
      %288 = vmatpush.msra.mxu0 0.0
      %289 = vmatpush.msra.mxu0 0.0
      %290 = vmatpush.msra.mxu0 0.0
      %291 = vmatpush.msra.mxu0 %v274
      %292 = vmatmul.f32.gmra.mxu0 %v234
      %v293 = vpop.f32.mrf.mxu0
      %v294 = vadd.f32 0.0, %v293
      %295 = vdwg.mxu0
      %v296 = vmul.f32 %v183, %v183
      %297 = vmatpush.msra.mxu0 %v200
      %298 = vmatpush.msra.mxu0 %v199
      %299 = vmatpush.msra.mxu0 %v198
      %300 = vmatpush.msra.mxu0 %v197
      %301 = vmatpush.msra.mxu0 %v196
      %302 = vmatpush.msra.mxu0 %v195
      %303 = vmatpush.msra.mxu0 %v194
      %304 = vmatpush.msra.mxu0 %v193
      %305 = vmatpush.msra.mxu0 %v192
      %306 = vmatpush.msra.mxu0 %v191
      %307 = vmatpush.msra.mxu0 %v190
      %308 = vmatpush.msra.mxu0 %v189
      %309 = vmatpush.msra.mxu0 %v188
      %310 = vmatpush.msra.mxu0 %v187
      %311 = vmatpush.msra.mxu0 %v186
      %312 = vmatpush.msra.mxu0 %v185
      %313 = vmatmul.f32.gmra.mxu0 %v296
      %v314 = vpop.f32.mrf.mxu0
      %v315 = vadd.f32 0.0, %v314
      %316 = vdwg.mxu0
      %317 = vmatpush.msra.mxu0 0.0
      %318 = vmatpush.msra.mxu0 0.0
      %319 = vmatpush.msra.mxu0 0.0
      %320 = vmatpush.msra.mxu0 0.0
      %321 = vmatpush.msra.mxu0 0.0
      %322 = vmatpush.msra.mxu0 0.0
      %323 = vmatpush.msra.mxu0 0.0
      %324 = vmatpush.msra.mxu0 0.0
      %325 = vmatpush.msra.mxu0 0.0
      %326 = vmatpush.msra.mxu0 0.0
      %327 = vmatpush.msra.mxu0 0.0
      %328 = vmatpush.msra.mxu0 0.0
      %329 = vmatpush.msra.mxu0 0.0
      %330 = vmatpush.msra.mxu0 0.0
      %331 = vmatpush.msra.mxu0 0.0
      %332 = vmatpush.msra.mxu0 %v315
      %333 = vmatmul.f32.gmra.mxu0 %v234
      %v334 = vpop.f32.mrf.mxu0
      %v335 = vadd.f32 0.0, %v334
      %336 = vdwg.mxu0
      %v337 = vmul.f32 %v184, %v184
      %338 = vmatpush.msra.mxu0 %v200
      %339 = vmatpush.msra.mxu0 %v199
      %340 = vmatpush.msra.mxu0 %v198
      %341 = vmatpush.msra.mxu0 %v197
      %342 = vmatpush.msra.mxu0 %v196
      %343 = vmatpush.msra.mxu0 %v195
      %344 = vmatpush.msra.mxu0 %v194
      %345 = vmatpush.msra.mxu0 %v193
      %346 = vmatpush.msra.mxu0 %v192
      %347 = vmatpush.msra.mxu0 %v191
      %348 = vmatpush.msra.mxu0 %v190
      %349 = vmatpush.msra.mxu0 %v189
      %350 = vmatpush.msra.mxu0 %v188
      %351 = vmatpush.msra.mxu0 %v187
      %352 = vmatpush.msra.mxu0 %v186
      %353 = vmatpush.msra.mxu0 %v185
      %354 = vmatmul.f32.gmra.mxu0 %v337
      %v355 = vpop.f32.mrf.mxu0
      %v356 = vadd.f32 0.0, %v355
      %357 = vdwg.mxu0
      %358 = vmatpush.msra.mxu0 0.0
      %359 = vmatpush.msra.mxu0 0.0
      %360 = vmatpush.msra.mxu0 0.0
      %361 = vmatpush.msra.mxu0 0.0
      %362 = vmatpush.msra.mxu0 0.0
      %363 = vmatpush.msra.mxu0 0.0
      %364 = vmatpush.msra.mxu0 0.0
      %365 = vmatpush.msra.mxu0 0.0
      %366 = vmatpush.msra.mxu0 0.0
      %367 = vmatpush.msra.mxu0 0.0
      %368 = vmatpush.msra.mxu0 0.0
      %369 = vmatpush.msra.mxu0 0.0
      %370 = vmatpush.msra.mxu0 0.0
      %371 = vmatpush.msra.mxu0 0.0
      %372 = vmatpush.msra.mxu0 0.0
      %373 = vmatpush.msra.mxu0 %v356
      %374 = vmatmul.f32.gmra.mxu0 %v234
      %v375 = vpop.f32.mrf.mxu0
      %v376 = vadd.f32 0.0, %v375
      %377 = vdwg.mxu0
      %v378 = vmul.f32 %v183, %v184
      %379 = vmatpush.msra.mxu0 %v200
      %380 = vmatpush.msra.mxu0 %v199
      %381 = vmatpush.msra.mxu0 %v198
      %382 = vmatpush.msra.mxu0 %v197
      %383 = vmatpush.msra.mxu0 %v196
      %384 = vmatpush.msra.mxu0 %v195
      %385 = vmatpush.msra.mxu0 %v194
      %386 = vmatpush.msra.mxu0 %v193
      %387 = vmatpush.msra.mxu0 %v192
      %388 = vmatpush.msra.mxu0 %v191
      %389 = vmatpush.msra.mxu0 %v190
      %390 = vmatpush.msra.mxu0 %v189
      %391 = vmatpush.msra.mxu0 %v188
      %392 = vmatpush.msra.mxu0 %v187
      %393 = vmatpush.msra.mxu0 %v186
      %394 = vmatpush.msra.mxu0 %v185
      %395 = vmatmul.f32.gmra.mxu0 %v378
      %v396 = vpop.f32.mrf.mxu0
      %v397 = vadd.f32 0.0, %v396
      %398 = vdwg.mxu0
      %399 = vmatpush.msra.mxu0 0.0
      %400 = vmatpush.msra.mxu0 0.0
      %401 = vmatpush.msra.mxu0 0.0
      %402 = vmatpush.msra.mxu0 0.0
      %403 = vmatpush.msra.mxu0 0.0
      %404 = vmatpush.msra.mxu0 0.0
      %405 = vmatpush.msra.mxu0 0.0
      %406 = vmatpush.msra.mxu0 0.0
      %407 = vmatpush.msra.mxu0 0.0
      %408 = vmatpush.msra.mxu0 0.0
      %409 = vmatpush.msra.mxu0 0.0
      %410 = vmatpush.msra.mxu0 0.0
      %411 = vmatpush.msra.mxu0 0.0
      %412 = vmatpush.msra.mxu0 0.0
      %413 = vmatpush.msra.mxu0 0.0
      %414 = vmatpush.msra.mxu0 %v397
      %415 = vmatmul.f32.gmra.mxu0 %v234
      %v416 = vpop.f32.mrf.mxu0
      %v417 = vadd.f32 0.0, %v416
      %418 = vdwg.mxu0
      %v419 = vmul.f32 %v254, %v294
      %v420 = vmul.f32 %v419, 0.008
      %v421 = vsub.f32 %v417, %v420
      %v422 = vmul.f32 %v254, %v254
      %v423 = vmul.f32 %v422, 0.008
      %v424 = vsub.f32 %v335, %v423
      %v425 = vmul.f32 %v294, %v294
      %v426 = vmul.f32 %v425, 0.008
      %v427 = vsub.f32 %v376, %v426
      %v428 = vmul.f32 %v421, %v421
      %v429 = vmul.f32 %v424, %v427
      %v430 = vadd.f32 %v429, 0.001
      %v431 = vrcp.pop %v430
      %v432 = vmul.f32 %v430, %v431
      %v433 = vsub.f32 1.0, %v432
      %v434 = vmul.f32 %v431, %v433
      %v435 = vadd.f32 %v431, %v434
      %vm436 = vweird.f32 %v430
      %vm437 = vweird.f32 %v431
      %vm438 = vmor %vm436, %vm437
      %v439 = vsel %vm438, %v431, %v435
      %v440 = vand.u32 2147483647, %v430
      %vm441 = vcmp.eq.f32.partialorder %v440, 8.507059e+37
      %v442 = vand.u32 %v430, 2147483648
      %v443 = vor.u32 1.1754944e-38, %v442
      %v444 = vsel %vm441, %v443, %v439
      %v445 = vmul.f32 %v428, %v444
      %446 = vst [vmem:[%s182] sm:$0xff] %v445
      %p447 = scmp.lt.s32.totalorder %s14, 1
      %s448 = scalar_select %p447, %s14, 1
      %s449 = smul.addr %s448, 8
      %s450 = scalar_lea.vmem %s3, %s449
      // Predicated region
      $region33: #{ncc_loss.1} parent=31 // pred_check
        %p451 = pneg %p105
      $region34: #{ncc_loss.1} parent=31 // pred_check_branch
        %453 = sbr.rel (%p451) target = $region36
      $region35: #{ncc_loss.1} parent=31 // pred_region
        _
      $region36: #{ncc_loss.1} parent=31 // pred_fallthru
        _
    $region32: #{ncc_loss.1} parent=5 // pred_fallthru
      _
    %p454 = scmp.le.s32.totalorder 2, %s9
    // Predicated region
    $region37: #{ncc_loss.1} parent=5 // pred_check
      %p455 = pneg %p454
    $region38: #{ncc_loss.1} parent=5 // pred_check_branch
      %457 = sbr.rel (%p455) target = $region40
    $region39: #{ncc_loss.1} parent=5 // pred_region
      %s458 = ssub.s32 %s9, 2
      // Predicated region
      $region41: #{ncc_loss.1} parent=39 // pred_check
        %p459 = pneg %p111
      $region42: #{ncc_loss.1} parent=39 // pred_check_branch
        %461 = sbr.rel (%p459) target = $region44
      $region43: #{ncc_loss.1} parent=39 // pred_region
        %p462 = scmp.lt.s32.totalorder %s15, 1
        %s463 = scalar_select %p462, %s15, 1
        %s464 = smul.addr %s463, 8
        %s465 = scalar_lea.vmem %s3, %s464
      $region44: #{ncc_loss.1} parent=39 // pred_fallthru
        _
    $region40: #{ncc_loss.1} parent=5 // pred_fallthru
      _
  $region6: #{ncc_loss.1} parent=0 // loop_footer
    %s13 = sadd.s32 1, %s9
  $region7: #{ncc_loss.1} parent=0 // loop_footer_branch
    %8 = sbr.rel target = $region3
  $region8: #{ncc_loss.1} parent=0 // loop_exit
    _

</llo_original>
